<compile_context>
chip_gen: v6e
topology: v6e:2x2x1
jax: 0.10.0
libtpu: 0.0.40
codegen_flags: <defaults>
</compile_context>

<pallas_src>
import jax
import jax.numpy as jnp
from jax.experimental import pallas as pl
from jax.experimental.pallas import tpu as pltpu

LANE = 128                 # one vreg lane tile; every packed group is one lane tile
GCOLS = 3 * LANE           # gate columns: [i | g | o]
W1_OFF = 3 * LANE          # fc1 columns
W2_OFF = 4 * LANE          # fc2 columns
WCOLS = 5 * LANE           # total packed weight columns


def lstm_fc_kernel(x_ref, w_ref, b_ref, out_ref):
    x = x_ref[...]                                           # (TM, D)
    D = x_ref.shape[1]

    # LSTM single step: one fused lane-dense matmul for all 6 gate projections.
    gates = (jnp.dot(x, w_ref[0:D, 0:GCOLS], preferred_element_type=jnp.float32)
             + b_ref[:, 0:GCOLS])                            # (TM, 384)

    # Static, tile-aligned lane slices (one full vreg tile each -> no cross-lane work).
    # sigmoid(z) == 0.5*tanh(z/2) + 0.5 : single native EUP op per gate.
    i = 0.5 * jnp.tanh(0.5 * gates[:, 0 * LANE:1 * LANE]) + 0.5
    g = jnp.tanh(gates[:, 1 * LANE:2 * LANE])
    o = 0.5 * jnp.tanh(0.5 * gates[:, 2 * LANE:3 * LANE]) + 0.5
    # Pad lanes: g == tanh(0) == 0  =>  h pad lanes are exactly 0.
    h = o * jnp.tanh(i * g)                                  # (TM, 128): [h_f | h_b | 0]

    # fc1 (fwd/bwd halves fused into one matmul) + ReLU; Dropout is identity (eval).
    y = (jnp.dot(h, w_ref[:, W1_OFF:W2_OFF], preferred_element_type=jnp.float32)
         + b_ref[:, W1_OFF:W2_OFF])
    y = jnp.maximum(y, 0.0)                                  # (TM, 128): [fc1 | 0]

    # fc2; lane-dense (TM, 128) store, real logits in cols [0:C).
    out_ref[...] = (jnp.dot(y, w_ref[:, W2_OFF:WCOLS], preferred_element_type=jnp.float32)
                    + b_ref[:, W2_OFF:WCOLS])


def lstm_forward(x, packed, *, block_rows=256):
    B, D = x.shape
    C = packed["num_classes"]

    # Sublane-aligned batch tile; pad B up to a whole number of tiles if needed.
    TM = min(block_rows, max(8, pl.cdiv(B, 8) * 8))
    Bp = pl.cdiv(B, TM) * TM
    if Bp != B:
        x = jnp.pad(x, ((0, Bp - B), (0, 0)))

    out = pl.pallas_call(
        lstm_fc_kernel,
        out_shape=jax.ShapeDtypeStruct((Bp, LANE), jnp.float32),
        grid_spec=pltpu.PrefetchScalarGridSpec(
            num_scalar_prefetch=0,
            grid=(Bp // TM,),
            in_specs=[
                pl.BlockSpec((TM, D), lambda i: (i, 0)),           # batch tile of x
                pl.BlockSpec((LANE, WCOLS), lambda i: (0, 0)),     # weight slab (resident)
                pl.BlockSpec((1, WCOLS), lambda i: (0, 0)),        # bias slab (resident)
            ],
            out_specs=pl.BlockSpec((TM, LANE), lambda i: (i, 0)),
        ),
        compiler_params=pltpu.CompilerParams(
            dimension_semantics=("parallel",)),                    # v7x: 2 TCs share tiles
    )(x, packed["w"], packed["b"])

    return out[:B, :C]


def init_params(key, dimension, hidden, num_classes):
    """Logical (unpacked) parameters matching the PyTorch module's shapes."""
    ks = jax.random.split(key, 11)
    s_lstm = 1.0 / jnp.sqrt(hidden)

    def u(k, shape, s):
        return jax.random.uniform(k, shape, jnp.float32, -s, s)

    # LSTM input weights per gate (PyTorch order i, f, g, o), pre-transposed to (D, H).
    wih_f = u(ks[0], (4, dimension, hidden), s_lstm)
    wih_b = u(ks[1], (4, dimension, hidden), s_lstm)
    # Combined biases b_ih + b_hh per gate (valid because h0 == 0).
    b_f = u(ks[2], (4, 1, hidden), s_lstm) + u(ks[3], (4, 1, hidden), s_lstm)
    b_b = u(ks[4], (4, 1, hidden), s_lstm) + u(ks[5], (4, 1, hidden), s_lstm)

    # fc1: Linear(2H -> H) split into h_fwd / h_bwd halves, stored (in, out).
    s1 = 1.0 / jnp.sqrt(2 * hidden)
    w1f = u(ks[6], (hidden, hidden), s1)
    w1b = u(ks[7], (hidden, hidden), s1)
    b1 = u(ks[8], (1, hidden), s1)

    # fc2: Linear(H -> num_classes), stored (in, out).
    s2 = 1.0 / jnp.sqrt(hidden)
    w2 = u(ks[9], (hidden, num_classes), s2)
    b2 = u(ks[10], (1, num_classes), s2)

    return dict(wih_f=wih_f, b_f=b_f, wih_b=wih_b, b_b=b_b,
                w1f=w1f, w1b=w1b, b1=b1, w2=w2, b2=b2)


def pack_params(p):
    """Wrapper-side layout plumbing: fuse ALL weights/biases into two VMEM slabs.

    Zero-padding invariant: every lane/row not explicitly written below MUST stay
    zero (it guarantees h / y pad lanes are exactly 0 and fc contractions pick up
    no garbage).  Both slabs start from jnp.zeros, so this holds by construction.
    """
    D, H = p["wih_f"].shape[1], p["wih_f"].shape[2]
    C = p["w2"].shape[1]
    assert 2 * H <= LANE, "packed layout assumes 2*hidden <= 128"
    assert D <= LANE and C <= LANE

    W = jnp.zeros((LANE, WCOLS), jnp.float32)
    b = jnp.zeros((1, WCOLS), jnp.float32)

    # Gate groups at cols [0:128) [128:256) [256:384); PyTorch gate order is
    # (i, f, g, o) and f is skipped because c0 == 0 -> f * c0 == 0.
    for col, gi in zip((0, LANE, 2 * LANE), (0, 2, 3)):
        W = W.at[:D, col:col + H].set(p["wih_f"][gi])
        W = W.at[:D, col + H:col + 2 * H].set(p["wih_b"][gi])
        b = b.at[:, col:col + H].set(p["b_f"][gi])
        b = b.at[:, col + H:col + 2 * H].set(p["b_b"][gi])

    # fc1 at cols [384:512): rows [0:H) take h_fwd, rows [H:2H) take h_bwd.
    W = W.at[:H, W1_OFF:W1_OFF + H].set(p["w1f"])
    W = W.at[H:2 * H, W1_OFF:W1_OFF + H].set(p["w1b"])
    b = b.at[:, W1_OFF:W1_OFF + H].set(p["b1"])

    # fc2 at cols [512:640): only rows [0:H) / cols [0:C) are real.
    W = W.at[:H, W2_OFF:W2_OFF + C].set(p["w2"])
    b = b.at[:, W2_OFF:W2_OFF + C].set(p["b2"])

    return dict(w=W, b=b, num_classes=C)


def ref_forward(x, p):
    """Pure-JAX reference on the logical (unpacked) parameters."""
    def step(w, b):
        i = jax.nn.sigmoid(x @ w[0] + b[0])
        g = jnp.tanh(x @ w[2] + b[2])
        o = jax.nn.sigmoid(x @ w[3] + b[3])
        return o * jnp.tanh(i * g)

    h_f = step(p["wih_f"], p["b_f"])
    h_b = step(p["wih_b"], p["b_b"])
    y = jnp.maximum(h_f @ p["w1f"] + h_b @ p["w1b"] + p["b1"], 0.0)
    return y @ p["w2"] + p["b2"]


if __name__ == "__main__":
    # args.dimension=32, args.hidden_size=32, args.num_of_class=4, batch=8
    B, DIM, HID, NCLS = 8, 32, 32, 4

    key = jax.random.PRNGKey(0)
    kx, kp = jax.random.split(key)
    x = jax.random.normal(kx, (B, DIM), dtype=jnp.float32)
    params = init_params(kp, DIM, HID, NCLS)
    packed = pack_params(params)

    out = lstm_forward(x, packed)
    out = jax.block_until_ready(out)

    ref = ref_forward(x, params)
    assert out.shape == (B, NCLS)
    assert jnp.allclose(out, ref, atol=1e-5, rtol=1e-5), "kernel mismatch vs JAX reference"

    print("KERNEL_OK")
</pallas_src>

<mosaic_0001>
module attributes {stable_mosaic.version = 11 : i64} {
  func.func @lstm_fc_kernel(%arg0: i32, %arg1: memref<8x32xf32, #tpu.memory_space<vmem>>, %arg2: memref<128x640xf32, #tpu.memory_space<vmem>>, %arg3: memref<1x640xf32, #tpu.memory_space<vmem>>, %arg4: memref<8x128xf32, #tpu.memory_space<vmem>>) attributes {dimension_semantics = [#tpu.dimension_semantics<parallel>], iteration_bounds = array<i64: 1>, scalar_prefetch = 0 : i64, scratch_operands = 0 : i64, tpu.core_type = #tpu.core_type<tc>, window_params = [{transform_indices = @transform_0, window_bounds = array<i64: 8, 32>}, {pipeline_mode = #tpu.pipeline_mode<synchronous>, transform_indices = @transform_1, window_bounds = array<i64: 128, 640>}, {pipeline_mode = #tpu.pipeline_mode<synchronous>, transform_indices = @transform_2, window_bounds = array<i64: 1, 640>}, {transform_indices = @transform_3, window_bounds = array<i64: 8, 128>}]} {
    %c0 = arith.constant 0 : index
    %c0_0 = arith.constant 0 : index
    %0 = vector.load %arg1[%c0, %c0_0] : memref<8x32xf32, #tpu.memory_space<vmem>>, vector<8x32xf32>
    %c0_1 = arith.constant 0 : index
    %c0_2 = arith.constant 0 : index
    %1 = vector.load %arg2[%c0_1, %c0_2] : memref<128x640xf32, #tpu.memory_space<vmem>>, vector<32x384xf32>
    %cst = arith.constant dense<0.000000e+00> : vector<8x384xf32>
    %2 = tpu.matmul %0, %1, %cst {dimension_numbers = #tpu.dot_dimension_numbers<[1], [0], [0], [1], [0, 0, 1, 1], [], []>} : vector<8x32xf32>, vector<32x384xf32>, vector<8x384xf32> -> vector<8x384xf32>
    %c0_3 = arith.constant 0 : index
    %c0_4 = arith.constant 0 : index
    %3 = vector.load %arg3[%c0_3, %c0_4] : memref<1x640xf32, #tpu.memory_space<vmem>>, vector<1x384xf32>
    %4 = vector.broadcast %3 : vector<1x384xf32> to vector<8x384xf32>
    %5 = arith.addf %2, %4 : vector<8x384xf32>
    %6 = vector.extract_strided_slice %5 {offsets = [0, 0], sizes = [8, 128], strides = [1, 1]} : vector<8x384xf32> to vector<8x128xf32>
    %cst_5 = arith.constant 5.000000e-01 : f32
    %7 = vector.broadcast %cst_5 : f32 to vector<8x128xf32>
    %8 = arith.mulf %7, %6 : vector<8x128xf32>
    %9 = math.tanh %8 : vector<8x128xf32>
    %cst_6 = arith.constant 5.000000e-01 : f32
    %10 = vector.broadcast %cst_6 : f32 to vector<8x128xf32>
    %11 = arith.mulf %10, %9 : vector<8x128xf32>
    %cst_7 = arith.constant 5.000000e-01 : f32
    %12 = vector.broadcast %cst_7 : f32 to vector<8x128xf32>
    %13 = arith.addf %11, %12 : vector<8x128xf32>
    %14 = vector.extract_strided_slice %5 {offsets = [0, 128], sizes = [8, 128], strides = [1, 1]} : vector<8x384xf32> to vector<8x128xf32>
    %15 = math.tanh %14 : vector<8x128xf32>
    %16 = vector.extract_strided_slice %5 {offsets = [0, 256], sizes = [8, 128], strides = [1, 1]} : vector<8x384xf32> to vector<8x128xf32>
    %cst_8 = arith.constant 5.000000e-01 : f32
    %17 = vector.broadcast %cst_8 : f32 to vector<8x128xf32>
    %18 = arith.mulf %17, %16 : vector<8x128xf32>
    %19 = math.tanh %18 : vector<8x128xf32>
    %cst_9 = arith.constant 5.000000e-01 : f32
    %20 = vector.broadcast %cst_9 : f32 to vector<8x128xf32>
    %21 = arith.mulf %20, %19 : vector<8x128xf32>
    %cst_10 = arith.constant 5.000000e-01 : f32
    %22 = vector.broadcast %cst_10 : f32 to vector<8x128xf32>
    %23 = arith.addf %21, %22 : vector<8x128xf32>
    %24 = arith.mulf %13, %15 : vector<8x128xf32>
    %25 = math.tanh %24 : vector<8x128xf32>
    %26 = arith.mulf %23, %25 : vector<8x128xf32>
    %c0_11 = arith.constant 0 : index
    %c384 = arith.constant 384 : index
    %27 = vector.load %arg2[%c0_11, %c384] : memref<128x640xf32, #tpu.memory_space<vmem>>, vector<128x128xf32>
    %cst_12 = arith.constant dense<0.000000e+00> : vector<8x128xf32>
    %28 = tpu.matmul %26, %27, %cst_12 {dimension_numbers = #tpu.dot_dimension_numbers<[1], [0], [0], [1], [0, 0, 1, 1], [], []>} : vector<8x128xf32>, vector<128x128xf32>, vector<8x128xf32> -> vector<8x128xf32>
    %c0_13 = arith.constant 0 : index
    %c384_14 = arith.constant 384 : index
    %29 = vector.load %arg3[%c0_13, %c384_14] : memref<1x640xf32, #tpu.memory_space<vmem>>, vector<1x128xf32>
    %30 = vector.broadcast %29 : vector<1x128xf32> to vector<8x128xf32>
    %31 = arith.addf %28, %30 : vector<8x128xf32>
    %cst_15 = arith.constant 0.000000e+00 : f32
    %32 = vector.broadcast %cst_15 : f32 to vector<8x128xf32>
    %33 = arith.maximumf %31, %32 : vector<8x128xf32>
    %c0_16 = arith.constant 0 : index
    %c512 = arith.constant 512 : index
    %34 = vector.load %arg2[%c0_16, %c512] : memref<128x640xf32, #tpu.memory_space<vmem>>, vector<128x128xf32>
    %cst_17 = arith.constant dense<0.000000e+00> : vector<8x128xf32>
    %35 = tpu.matmul %33, %34, %cst_17 {dimension_numbers = #tpu.dot_dimension_numbers<[1], [0], [0], [1], [0, 0, 1, 1], [], []>} : vector<8x128xf32>, vector<128x128xf32>, vector<8x128xf32> -> vector<8x128xf32>
    %c0_18 = arith.constant 0 : index
    %c512_19 = arith.constant 512 : index
    %36 = vector.load %arg3[%c0_18, %c512_19] : memref<1x640xf32, #tpu.memory_space<vmem>>, vector<1x128xf32>
    %37 = vector.broadcast %36 : vector<1x128xf32> to vector<8x128xf32>
    %38 = arith.addf %35, %37 : vector<8x128xf32>
    %c0_20 = arith.constant 0 : index
    %c0_21 = arith.constant 0 : index
    %39 = vector.load %arg4[%c0_20, %c0_21] : memref<8x128xf32, #tpu.memory_space<vmem>>, vector<8x128xf32>
    tpu.vector_store %arg4[%c0_20, %c0_21], %38 {strides = array<i32>} : memref<8x128xf32, #tpu.memory_space<vmem>>, vector<8x128xf32>,
    return
  }
  func.func @transform_0(%arg0: i32) -> (i32, i32) {
    %c0_i32 = arith.constant 0 : i32
    %c0_i32_0 = arith.constant 0 : i32
    return %arg0, %c0_i32 : i32, i32
  }
  func.func @transform_1(%arg0: i32) -> (i32, i32) {
    %c0_i32 = arith.constant 0 : i32
    %c0_i32_0 = arith.constant 0 : i32
    %c0_i32_1 = arith.constant 0 : i32
    return %c0_i32, %c0_i32_0 : i32, i32
  }
  func.func @transform_2(%arg0: i32) -> (i32, i32) {
    %c0_i32 = arith.constant 0 : i32
    %c0_i32_0 = arith.constant 0 : i32
    %c0_i32_1 = arith.constant 0 : i32
    return %c0_i32, %c0_i32_0 : i32, i32
  }
  func.func @transform_3(%arg0: i32) -> (i32, i32) {
    %c0_i32 = arith.constant 0 : i32
    %c0_i32_0 = arith.constant 0 : i32
    return %arg0, %c0_i32 : i32, i32
  }
}

</mosaic_0001>

<llo_original>
// kernel: tpu_custom_call.1
$region0: #{tpu_custom_call.1}
  #allocation0 [shape = 'u32[]', space=smem, size = 0x4, offset = 0x4, fixed_abs, tag = 'smem constant byte address 0x4 - core index']
  #allocation1 [shape = 'u32[144,128]{1,0:T(1,128)}', space=vmem, size = 0x12000, scoped, tag = 'internal scratch']
  %s0 = inlined_call_operand.hbm [shape: f32[8,32], index: 0, kind: input, shape index: {}]
  %s1 = inlined_call_operand.hbm [shape: f32[128,640], index: 1, kind: input, shape index: {}]
  %s2 = inlined_call_operand.hbm [shape: f32[1,640], index: 2, kind: input, shape index: {}]
  %s3 = inlined_call_operand.hbm [shape: f32[8,128], index: 3, kind: output, shape index: {}]
  %s4 = sld [smem:[#allocation0]]
  $region34: #{tpu_custom_call.1} parent=0
    _
  %s6 = ssub.s32 1, %s4
  %s7 = scalar_select 0, %s6, %s4
  $region1: #{tpu_custom_call.1} parent=0
    #allocation2 [shape = 'u8[4096]{0}', space=vmem, size = 0x1000, scoped, tag = 'input window, operand 0, single buffered']
    #allocation3 [shape = 's32[1]{0}', space=sflag, size = 0x4, scoped, tag = 'scoped memory for tpu_custom_call.1']
    #allocation4 [shape = 's32[1]{0}', space=sflag, size = 0x4, scoped, tag = 'scoped memory for tpu_custom_call.1']
    #allocation5 [shape = 'u8[327680]{0}', space=vmem, size = 0x50000, scoped, tag = 'input window, operand 1, single buffered']
    #allocation6 [shape = 's32[1]{0}', space=sflag, size = 0x4, scoped, tag = 'scoped memory for tpu_custom_call.1']
    #allocation7 [shape = 'u8[2560]{0}', space=vmem, size = 0xc00, scoped, tag = 'input window, operand 2, single buffered']
    #allocation8 [shape = 'u8[4096]{0}', space=vmem, size = 0x1000, scoped, tag = 'output window, operand 0, single buffered']
    %8 = vsyncpa [#allocation3], 0
    %9 = vsyncpa [#allocation6], 0
    %10 = vsyncpa [#allocation4], 0
    // Predicated region
    $region2: #{tpu_custom_call.1} parent=1 // pred_check
      _
    $region3: #{tpu_custom_call.1} parent=1 // pred_check_branch
      %12 = sbr.rel (0) target = $region5
    $region4: #{tpu_custom_call.1} parent=1 // pred_region
      %s14 = ssub.s32 128, 128
      %15 = vsyncadd [#allocation3], %s14
      %s17 = sshll.u32 [#allocation2], 4
      %s18 = int_to_ptr.vmem [resolvable:$true] %s17
      %20 = dma.hbm_to_vmem [thread:$0]  %s0, 128, %s18, [#allocation3]
    $region5: #{tpu_custom_call.1} parent=1 // pred_fallthru
      _
    // Predicated region
    $region6: #{tpu_custom_call.1} parent=1 // pred_check
      _
    $region7: #{tpu_custom_call.1} parent=1 // pred_check_branch
      %22 = sbr.rel (0) target = $region9
    $region8: #{tpu_custom_call.1} parent=1 // pred_region
      %s24 = ssub.s32 10240, 10240
      %25 = vsyncadd [#allocation6], %s24
      %s26 = sshll.u32 [#allocation5], 4
      %s27 = int_to_ptr.vmem [resolvable:$true] %s26
      %32 = dma.hbm_to_vmem [thread:$0]  %s1, 10240, %s27, [#allocation6], 640, 640, 40
    $region9: #{tpu_custom_call.1} parent=1 // pred_fallthru
      _
    // Predicated region
    $region10: #{tpu_custom_call.1} parent=1 // pred_check
      _
    $region11: #{tpu_custom_call.1} parent=1 // pred_check_branch
      %34 = sbr.rel (0) target = $region13
    $region12: #{tpu_custom_call.1} parent=1 // pred_region
      %s36 = ssub.s32 80, 80
      %37 = vsyncadd [#allocation6], %s36
      %s39 = sshll.u32 [#allocation7], 4
      %s40 = int_to_ptr.vmem [resolvable:$true] %s39
      %42 = dma.hbm_to_vmem [thread:$0]  %s2, 80, %s40, [#allocation6]
    $region13: #{tpu_custom_call.1} parent=1 // pred_fallthru
      _
    // Predicated region
    $region14: #{tpu_custom_call.1} parent=1 // pred_check
      _
    $region15: #{tpu_custom_call.1} parent=1 // pred_check_branch
      %44 = sbr.rel (0) target = $region17
    $region16: #{tpu_custom_call.1} parent=1 // pred_region
      %45 = dma.done [#allocation3], 128
    $region17: #{tpu_custom_call.1} parent=1 // pred_fallthru
      _
    // Predicated region
    $region18: #{tpu_custom_call.1} parent=1 // pred_check
      _
    $region19: #{tpu_custom_call.1} parent=1 // pred_check_branch
      %47 = sbr.rel (0) target = $region21
    $region20: #{tpu_custom_call.1} parent=1 // pred_region
      %48 = dma.done [#allocation6], 10240
    $region21: #{tpu_custom_call.1} parent=1 // pred_fallthru
      _
    // Predicated region
    $region22: #{tpu_custom_call.1} parent=1 // pred_check
      _
    $region23: #{tpu_custom_call.1} parent=1 // pred_check_branch
      %50 = sbr.rel (0) target = $region25
    $region24: #{tpu_custom_call.1} parent=1 // pred_region
      %51 = dma.done [#allocation6], 80
    $region25: #{tpu_custom_call.1} parent=1 // pred_fallthru
      _
    %v52 = vld [vmem:[#allocation2] sm:$0xff]
    %v53 = vld [vmem:[#allocation5] sm:$0xff]
    %v54 = vld [vmem:[#allocation5 + $0x8] sm:$0xff]
    %v55 = vld [vmem:[#allocation5 + $0x10] sm:$0xff]
    %v56 = vld [vmem:[#allocation5 + $0x28] sm:$0xff]
    %v57 = vld [vmem:[#allocation5 + $0x30] sm:$0xff]
    %v58 = vld [vmem:[#allocation5 + $0x38] sm:$0xff]
    %v59 = vld [vmem:[#allocation5 + $0x50] sm:$0xff]
    %v60 = vld [vmem:[#allocation5 + $0x58] sm:$0xff]
    %v61 = vld [vmem:[#allocation5 + $0x60] sm:$0xff]
    %v62 = vld [vmem:[#allocation5 + $0x78] sm:$0xff]
    %v63 = vld [vmem:[#allocation5 + $0x80] sm:$0xff]
    %v64 = vld [vmem:[#allocation5 + $0x88] sm:$0xff]
    %v65 = vld [vmem:[#allocation7] sm:$0x7]
    %v67 = vlaneseq
    %v68 = vshrl.u32 %v67, 7
    %v69 = vsub.s32 0, %v68
    %v70 = vrot.slane %v65, %v69
    %v71 = vlaneseq
    %v72 = vshrl.u32 %v71, 7
    %v73 = vsub.s32 1, %v72
    %v74 = vrot.slane %v65, %v73
    %v75 = vlaneseq
    %v76 = vshrl.u32 %v75, 7
    %v77 = vsub.s32 2, %v76
    %v78 = vrot.slane %v65, %v77
    %vm82 = vcmask 261120
    %v84 = vsel %vm82, %v52, 0
    %86 = vmatprep.subr.mxu0 0.0
    %87 = vmatpush1.msra.mxu0 0.0
    %88 = vmatprep.subr.mxu0 0.0
    %89 = vmatpush1.msra.mxu0 0.0
    %90 = vmatprep.subr.mxu0 0.0
    %91 = vmatpush1.msra.mxu0 0.0
    %92 = vmatprep.subr.mxu0 0.0
    %93 = vmatpush1.msra.mxu0 0.0
    %94 = vmatprep.subr.mxu0 0.0
    %95 = vmatpush1.msra.mxu0 0.0
    %96 = vmatprep.subr.mxu0 0.0
    %97 = vmatpush1.msra.mxu0 0.0
    %98 = vmatprep.subr.mxu0 0.0
    %99 = vmatpush1.msra.mxu0 0.0
    %100 = vmatprep.subr.mxu0 0.0
    %101 = vmatpush1.msra.mxu0 0.0
    %102 = vmatprep.subr.mxu0 0.0
    %103 = vmatpush1.msra.mxu0 0.0
    %104 = vmatprep.subr.mxu0 0.0
    %105 = vmatpush1.msra.mxu0 0.0
    %106 = vmatprep.subr.mxu0 0.0
    %107 = vmatpush1.msra.mxu0 0.0
    %108 = vmatprep.subr.mxu0 0.0
    %109 = vmatpush1.msra.mxu0 0.0
    %110 = vmatprep.subr.mxu0 %v63
    %111 = vmatpush1.msra.mxu0 %v62
    %112 = vmatprep.subr.mxu0 %v60
    %113 = vmatpush1.msra.mxu0 %v59
    %114 = vmatprep.subr.mxu0 %v57
    %115 = vmatpush1.msra.mxu0 %v56
    %116 = vmatprep.subr.mxu0 %v54
    %117 = vmatpush1.msra.mxu0 %v53
    %118 = vmatprep.subr.mxu0 0.0
    %119 = vmatpush2.msra.mxu0 0.0
    %120 = vmatprep.subr.mxu0 0.0
    %121 = vmatpush2.msra.mxu0 0.0
    %122 = vmatprep.subr.mxu0 0.0
    %123 = vmatpush2.msra.mxu0 0.0
    %124 = vmatprep.subr.mxu0 0.0
    %125 = vmatpush2.msra.mxu0 0.0
    %126 = vmatprep.subr.mxu0 0.0
    %127 = vmatpush2.msra.mxu0 0.0
    %128 = vmatprep.subr.mxu0 0.0
    %129 = vmatpush2.msra.mxu0 0.0
    %130 = vmatprep.subr.mxu0 0.0
    %131 = vmatpush2.msra.mxu0 0.0
    %132 = vmatprep.subr.mxu0 0.0
    %133 = vmatpush2.msra.mxu0 0.0
    %134 = vmatprep.subr.mxu0 0.0
    %135 = vmatpush2.msra.mxu0 0.0
    %136 = vmatprep.subr.mxu0 0.0
    %137 = vmatpush2.msra.mxu0 0.0
    %138 = vmatprep.subr.mxu0 0.0
    %139 = vmatpush2.msra.mxu0 0.0
    %140 = vmatprep.subr.mxu0 0.0
    %141 = vmatpush2.msra.mxu0 0.0
    %142 = vmatprep.subr.mxu0 0.0
    %143 = vmatpush2.msra.mxu0 0.0
    %144 = vmatprep.subr.mxu0 0.0
    %145 = vmatpush2.msra.mxu0 0.0
    %146 = vmatprep.subr.mxu0 0.0
    %147 = vmatpush2.msra.mxu0 0.0
    %148 = vmatprep.subr.mxu0 0.0
    %149 = vmatpush2.msra.mxu0 0.0
    %150 = vmatprep.mubr.f32.mxu0 0.0
    %151 = vmatmul.mubr.f32.gmra.mxu0 %v84
    %v152 = vpop.f32.mrf.mxu0
    %v153 = vadd.f32 %v70, %v152
    %v154 = vpop.f32.mrf.mxu0
    %v155 = vadd.f32 %v74, %v154
    %156 = vdwg.mxu0
    %157 = vmatprep.subr.mxu0 0.0
    %158 = vmatpush1.msra.mxu0 0.0
    %159 = vmatprep.subr.mxu0 0.0
    %160 = vmatpush1.msra.mxu0 0.0
    %161 = vmatprep.subr.mxu0 0.0
    %162 = vmatpush1.msra.mxu0 0.0
    %163 = vmatprep.subr.mxu0 0.0
    %164 = vmatpush1.msra.mxu0 0.0
    %165 = vmatprep.subr.mxu0 0.0
    %166 = vmatpush1.msra.mxu0 0.0
    %167 = vmatprep.subr.mxu0 0.0
    %168 = vmatpush1.msra.mxu0 0.0
    %169 = vmatprep.subr.mxu0 0.0
    %170 = vmatpush1.msra.mxu0 0.0
    %171 = vmatprep.subr.mxu0 0.0
    %172 = vmatpush1.msra.mxu0 0.0
    %173 = vmatprep.subr.mxu0 0.0
    %174 = vmatpush1.msra.mxu0 0.0
    %175 = vmatprep.subr.mxu0 0.0
    %176 = vmatpush1.msra.mxu0 0.0
    %177 = vmatprep.subr.mxu0 0.0
    %178 = vmatpush1.msra.mxu0 0.0
    %179 = vmatprep.subr.mxu0 0.0
    %180 = vmatpush1.msra.mxu0 0.0
    %181 = vmatprep.subr.mxu0 0.0
    %182 = vmatpush1.msra.mxu0 %v64
    %183 = vmatprep.subr.mxu0 0.0
    %184 = vmatpush1.msra.mxu0 %v61
    %185 = vmatprep.subr.mxu0 0.0
    %186 = vmatpush1.msra.mxu0 %v58
    %187 = vmatprep.subr.mxu0 0.0
    %188 = vmatpush1.msra.mxu0 %v55
    %189 = vmatprep.subr.mxu0 0.0
    %190 = vmatpush2.msra.mxu0 0.0
    %191 = vmatprep.subr.mxu0 0.0
    %192 = vmatpush2.msra.mxu0 0.0
    %193 = vmatprep.subr.mxu0 0.0
    %194 = vmatpush2.msra.mxu0 0.0
    %195 = vmatprep.subr.mxu0 0.0
    %196 = vmatpush2.msra.mxu0 0.0
    %197 = vmatprep.subr.mxu0 0.0
    %198 = vmatpush2.msra.mxu0 0.0
    %199 = vmatprep.subr.mxu0 0.0
    %200 = vmatpush2.msra.mxu0 0.0
    %201 = vmatprep.subr.mxu0 0.0
    %202 = vmatpush2.msra.mxu0 0.0
    %203 = vmatprep.subr.mxu0 0.0
    %204 = vmatpush2.msra.mxu0 0.0
    %205 = vmatprep.subr.mxu0 0.0
    %206 = vmatpush2.msra.mxu0 0.0
    %207 = vmatprep.subr.mxu0 0.0
    %208 = vmatpush2.msra.mxu0 0.0
    %209 = vmatprep.subr.mxu0 0.0
    %210 = vmatpush2.msra.mxu0 0.0
    %211 = vmatprep.subr.mxu0 0.0
    %212 = vmatpush2.msra.mxu0 0.0
    %213 = vmatprep.subr.mxu0 0.0
    %214 = vmatpush2.msra.mxu0 0.0
    %215 = vmatprep.subr.mxu0 0.0
    %216 = vmatpush2.msra.mxu0 0.0
    %217 = vmatprep.subr.mxu0 0.0
    %218 = vmatpush2.msra.mxu0 0.0
    %219 = vmatprep.subr.mxu0 0.0
    %220 = vmatpush2.msra.mxu0 0.0
    %221 = vmatprep.mubr.f32.mxu0 0.0
    %222 = vmatmul.mubr.f32.gmra.mxu0 %v84
    %v223 = vpop.f32.mrf.mxu0
    %v224 = vadd.f32 %v78, %v223
    %v225 = vpop.f32.mrf.mxu0
    %226 = vdwg.mxu0
    %v227 = vmul.f32 %v153, 0.5
    %v228 = vtanh.pop %v227
    %v229 = vmul.f32 %v228, 0.5
    %v230 = vadd.f32 %v229, 0.5
    %v231 = vtanh.pop %v155
    %v232 = vmul.f32 %v224, 0.5
    %v233 = vtanh.pop %v232
    %v234 = vmul.f32 %v233, 0.5
    %v235 = vadd.f32 %v234, 0.5
    %v236 = vmul.f32 %v230, %v231
    %v237 = vtanh.pop %v236
    %v238 = vmul.f32 %v235, %v237
    %v239 = vld [vmem:[#allocation5 + $0x18] sm:$0xff]
    %v240 = vld [vmem:[#allocation5 + $0x40] sm:$0xff]
    %v241 = vld [vmem:[#allocation5 + $0x68] sm:$0xff]
    %v242 = vld [vmem:[#allocation5 + $0x90] sm:$0xff]
    %v243 = vld [vmem:[#allocation5 + $0xb8] sm:$0xff]
    %v244 = vld [vmem:[#allocation5 + $0xe0] sm:$0xff]
    %v245 = vld [vmem:[#allocation5 + $0x108] sm:$0xff]
    %v246 = vld [vmem:[#allocation5 + $0x130] sm:$0xff]
    %v247 = vld [vmem:[#allocation5 + $0x158] sm:$0xff]
    %v248 = vld [vmem:[#allocation5 + $0x180] sm:$0xff]
    %v249 = vld [vmem:[#allocation5 + $0x1a8] sm:$0xff]
    %v250 = vld [vmem:[#allocation5 + $0x1d0] sm:$0xff]
    %v251 = vld [vmem:[#allocation5 + $0x1f8] sm:$0xff]
    %v252 = vld [vmem:[#allocation5 + $0x220] sm:$0xff]
    %v253 = vld [vmem:[#allocation5 + $0x248] sm:$0xff]
    %v254 = vld [vmem:[#allocation5 + $0x270] sm:$0xff]
    %v255 = vld [vmem:[#allocation7 + $0x3] sm:$0x1]
    %v257 = vlaneseq
    %v258 = vshrl.u32 %v257, 7
    %v259 = vsub.s32 0, %v258
    %v260 = vrot.slane %v255, %v259
    %262 = vmatprep.subr.mxu0 0.0
    %263 = vmatpush1.msra.mxu0 %v254
    %264 = vmatprep.subr.mxu0 0.0
    %265 = vmatpush1.msra.mxu0 %v253
    %266 = vmatprep.subr.mxu0 0.0
    %267 = vmatpush1.msra.mxu0 %v252
    %268 = vmatprep.subr.mxu0 0.0
    %269 = vmatpush1.msra.mxu0 %v251
    %270 = vmatprep.subr.mxu0 0.0
    %271 = vmatpush1.msra.mxu0 %v250
    %272 = vmatprep.subr.mxu0 0.0
    %273 = vmatpush1.msra.mxu0 %v249
    %274 = vmatprep.subr.mxu0 0.0
    %275 = vmatpush1.msra.mxu0 %v248
    %276 = vmatprep.subr.mxu0 0.0
    %277 = vmatpush1.msra.mxu0 %v247
    %278 = vmatprep.subr.mxu0 0.0
    %279 = vmatpush1.msra.mxu0 %v246
    %280 = vmatprep.subr.mxu0 0.0
    %281 = vmatpush1.msra.mxu0 %v245
    %282 = vmatprep.subr.mxu0 0.0
    %283 = vmatpush1.msra.mxu0 %v244
    %284 = vmatprep.subr.mxu0 0.0
    %285 = vmatpush1.msra.mxu0 %v243
    %286 = vmatprep.subr.mxu0 0.0
    %287 = vmatpush1.msra.mxu0 %v242
    %288 = vmatprep.subr.mxu0 0.0
    %289 = vmatpush1.msra.mxu0 %v241
    %290 = vmatprep.subr.mxu0 0.0
    %291 = vmatpush1.msra.mxu0 %v240
    %292 = vmatprep.subr.mxu0 0.0
    %293 = vmatpush1.msra.mxu0 %v239
    %294 = vmatprep.subr.mxu0 0.0
    %295 = vmatpush2.msra.mxu0 0.0
    %296 = vmatprep.subr.mxu0 0.0
    %297 = vmatpush2.msra.mxu0 0.0
    %298 = vmatprep.subr.mxu0 0.0
    %299 = vmatpush2.msra.mxu0 0.0
    %300 = vmatprep.subr.mxu0 0.0
    %301 = vmatpush2.msra.mxu0 0.0
    %302 = vmatprep.subr.mxu0 0.0
    %303 = vmatpush2.msra.mxu0 0.0
    %304 = vmatprep.subr.mxu0 0.0
    %305 = vmatpush2.msra.mxu0 0.0
    %306 = vmatprep.subr.mxu0 0.0
    %307 = vmatpush2.msra.mxu0 0.0
    %308 = vmatprep.subr.mxu0 0.0
    %309 = vmatpush2.msra.mxu0 0.0
    %310 = vmatprep.subr.mxu0 0.0
    %311 = vmatpush2.msra.mxu0 0.0
    %312 = vmatprep.subr.mxu0 0.0
    %313 = vmatpush2.msra.mxu0 0.0
    %314 = vmatprep.subr.mxu0 0.0
    %315 = vmatpush2.msra.mxu0 0.0
    %316 = vmatprep.subr.mxu0 0.0
    %317 = vmatpush2.msra.mxu0 0.0
    %318 = vmatprep.subr.mxu0 0.0
    %319 = vmatpush2.msra.mxu0 0.0
    %320 = vmatprep.subr.mxu0 0.0
    %321 = vmatpush2.msra.mxu0 0.0
    %322 = vmatprep.subr.mxu0 0.0
    %323 = vmatpush2.msra.mxu0 0.0
    %324 = vmatprep.subr.mxu0 0.0
    %325 = vmatpush2.msra.mxu0 0.0
    %326 = vmatprep.mubr.f32.mxu0 0.0
    %327 = vmatmul.mubr.f32.gmra.mxu0 %v238
    %v328 = vpop.f32.mrf.mxu0
    %v329 = vadd.f32 %v260, %v328
    %v330 = vpop.f32.mrf.mxu0
    %331 = vdwg.mxu0
    %v332 = vmax.f32 %v329, 0.0
    %v333 = vld [vmem:[#allocation5 + $0x20] sm:$0xff]
    %v334 = vld [vmem:[#allocation5 + $0x48] sm:$0xff]
    %v335 = vld [vmem:[#allocation5 + $0x70] sm:$0xff]
    %v336 = vld [vmem:[#allocation5 + $0x98] sm:$0xff]
    %v337 = vld [vmem:[#allocation5 + $0xc0] sm:$0xff]
    %v338 = vld [vmem:[#allocation5 + $0xe8] sm:$0xff]
    %v339 = vld [vmem:[#allocation5 + $0x110] sm:$0xff]
    %v340 = vld [vmem:[#allocation5 + $0x138] sm:$0xff]
    %v341 = vld [vmem:[#allocation5 + $0x160] sm:$0xff]
    %v342 = vld [vmem:[#allocation5 + $0x188] sm:$0xff]
    %v343 = vld [vmem:[#allocation5 + $0x1b0] sm:$0xff]
    %v344 = vld [vmem:[#allocation5 + $0x1d8] sm:$0xff]
    %v345 = vld [vmem:[#allocation5 + $0x200] sm:$0xff]
    %v346 = vld [vmem:[#allocation5 + $0x228] sm:$0xff]
    %v347 = vld [vmem:[#allocation5 + $0x250] sm:$0xff]
    %v348 = vld [vmem:[#allocation5 + $0x278] sm:$0xff]
    %v349 = vld [vmem:[#allocation7 + $0x4] sm:$0x1]
    %v351 = vlaneseq
    %v352 = vshrl.u32 %v351, 7
    %v353 = vsub.s32 0, %v352
    %v354 = vrot.slane %v349, %v353
    %356 = vmatprep.subr.mxu0 0.0
    %357 = vmatpush1.msra.mxu0 %v348
    %358 = vmatprep.subr.mxu0 0.0
    %359 = vmatpush1.msra.mxu0 %v347
    %360 = vmatprep.subr.mxu0 0.0
    %361 = vmatpush1.msra.mxu0 %v346
    %362 = vmatprep.subr.mxu0 0.0
    %363 = vmatpush1.msra.mxu0 %v345
    %364 = vmatprep.subr.mxu0 0.0
    %365 = vmatpush1.msra.mxu0 %v344
    %366 = vmatprep.subr.mxu0 0.0
    %367 = vmatpush1.msra.mxu0 %v343
    %368 = vmatprep.subr.mxu0 0.0
    %369 = vmatpush1.msra.mxu0 %v342
    %370 = vmatprep.subr.mxu0 0.0
    %371 = vmatpush1.msra.mxu0 %v341
    %372 = vmatprep.subr.mxu0 0.0
    %373 = vmatpush1.msra.mxu0 %v340
    %374 = vmatprep.subr.mxu0 0.0
    %375 = vmatpush1.msra.mxu0 %v339
    %376 = vmatprep.subr.mxu0 0.0
    %377 = vmatpush1.msra.mxu0 %v338
    %378 = vmatprep.subr.mxu0 0.0
    %379 = vmatpush1.msra.mxu0 %v337
    %380 = vmatprep.subr.mxu0 0.0
    %381 = vmatpush1.msra.mxu0 %v336
    %382 = vmatprep.subr.mxu0 0.0
    %383 = vmatpush1.msra.mxu0 %v335
    %384 = vmatprep.subr.mxu0 0.0
    %385 = vmatpush1.msra.mxu0 %v334
    %386 = vmatprep.subr.mxu0 0.0
    %387 = vmatpush1.msra.mxu0 %v333
    %388 = vmatprep.subr.mxu0 0.0
    %389 = vmatpush2.msra.mxu0 0.0
    %390 = vmatprep.subr.mxu0 0.0
    %391 = vmatpush2.msra.mxu0 0.0
    %392 = vmatprep.subr.mxu0 0.0
    %393 = vmatpush2.msra.mxu0 0.0
    %394 = vmatprep.subr.mxu0 0.0
    %395 = vmatpush2.msra.mxu0 0.0
    %396 = vmatprep.subr.mxu0 0.0
    %397 = vmatpush2.msra.mxu0 0.0
    %398 = vmatprep.subr.mxu0 0.0
    %399 = vmatpush2.msra.mxu0 0.0
    %400 = vmatprep.subr.mxu0 0.0
    %401 = vmatpush2.msra.mxu0 0.0
    %402 = vmatprep.subr.mxu0 0.0
    %403 = vmatpush2.msra.mxu0 0.0
    %404 = vmatprep.subr.mxu0 0.0
    %405 = vmatpush2.msra.mxu0 0.0
    %406 = vmatprep.subr.mxu0 0.0
    %407 = vmatpush2.msra.mxu0 0.0
    %408 = vmatprep.subr.mxu0 0.0
    %409 = vmatpush2.msra.mxu0 0.0
    %410 = vmatprep.subr.mxu0 0.0
    %411 = vmatpush2.msra.mxu0 0.0
    %412 = vmatprep.subr.mxu0 0.0
    %413 = vmatpush2.msra.mxu0 0.0
    %414 = vmatprep.subr.mxu0 0.0
    %415 = vmatpush2.msra.mxu0 0.0
    %416 = vmatprep.subr.mxu0 0.0
    %417 = vmatpush2.msra.mxu0 0.0
    %418 = vmatprep.subr.mxu0 0.0
    %419 = vmatpush2.msra.mxu0 0.0
    %420 = vmatprep.mubr.f32.mxu0 0.0
    %421 = vmatmul.mubr.f32.gmra.mxu0 %v332
    %v422 = vpop.f32.mrf.mxu0
    %v423 = vadd.f32 %v354, %v422
    %v424 = vpop.f32.mrf.mxu0
    %425 = vdwg.mxu0
    %426 = vst [vmem:[#allocation8] sm:$0xff] %v423
    // Predicated region
    $region26: #{tpu_custom_call.1} parent=1 // pred_check
      _
    $region27: #{tpu_custom_call.1} parent=1 // pred_check_branch
      %428 = sbr.rel (0) target = $region29
    $region28: #{tpu_custom_call.1} parent=1 // pred_region
      %s430 = ssub.s32 128, 128
      %431 = vsyncadd [#allocation4], %s430
      %s433 = sshll.u32 [#allocation8], 4
      %s434 = int_to_ptr.vmem [resolvable:$true] %s433
      %436 = dma.vmem_to_hbm [thread:$0]  %s434, 128, %s3, [#allocation4]
    $region29: #{tpu_custom_call.1} parent=1 // pred_fallthru
      _
    // Predicated region
    $region30: #{tpu_custom_call.1} parent=1 // pred_check
      _
    $region31: #{tpu_custom_call.1} parent=1 // pred_check_branch
      %438 = sbr.rel (0) target = $region33
    $region32: #{tpu_custom_call.1} parent=1 // pred_region
      %439 = dma.done [#allocation4], 128
    $region33: #{tpu_custom_call.1} parent=1 // pred_fallthru
      _
    %440 = vsyncpa [#allocation3], 1
    %441 = vsyncpa [#allocation6], 1
    %442 = vsyncpa [#allocation4], 1

</llo_original>
